<compile_context>
chip_gen: v7x
topology: tpu7x:2x2x1
jax: 0.10.0
libtpu: 0.0.40
codegen_flags: <defaults>
</compile_context>

<pallas_src>
import functools

import jax
import jax.numpy as jnp
from jax.experimental import pallas as pl
from jax.experimental.pallas import tpu as pltpu

LEAKY_ALPHA = 0.2
NEG_INF = -1e9
CPAD = 128  # lane-dense padded class dimension for the output store


def _dgat_kernel(x_ref, w_ref, a_ref, mask_ref, fcw_ref, fcb_ref, out_ref,
                 *, heads, nhid):
    # ---- fused per-head projection: one lane-dense MXU matmul -------------
    x = x_ref[...]                                   # (N, F)          bf16
    w_all = w_ref[...]                               # (F, heads*nhid) bf16
    h_all = jnp.dot(x, w_all, preferred_element_type=jnp.float32)   # (N, heads*nhid) f32
    h_bf = h_all.astype(jnp.bfloat16)                # single cast, sliced per head below

    # ---- attention src/dst scores for all heads via one small matmul ------
    # a_ref is block-diagonal: column 2i = a_src[i], column 2i+1 = a_dst[i]
    scores = jnp.dot(h_bf, a_ref[...], preferred_element_type=jnp.float32)  # (N, 2*(heads-1)) f32

    fcw = fcw_ref[...]                               # (heads*nhid, CPAD) bf16

    # ---- head `heads-1`: plain projection, no attention (torch.mm(x, W[-1])),
    #      concatenated FIRST in the reference's torch.cat -------------------
    plain = h_all[:, (heads - 1) * nhid: heads * nhid]               # (N, D) f32
    feat0 = jnp.maximum(plain, 0.0)                                  # ReLU
    logits = jnp.dot(feat0.astype(jnp.bfloat16), fcw[0:nhid, :],
                     preferred_element_type=jnp.float32)             # (N, CPAD)

    # ---- attention heads 0..heads-2 (static unroll: 3 heads) ---------------
    for i in range(heads - 1):
        h_i_bf = h_bf[:, i * nhid:(i + 1) * nhid]                    # (N, D) bf16
        f_src = scores[:, 2 * i: 2 * i + 1]                          # (N, 1) f32
        f_dst = scores[:, 2 * i + 1: 2 * i + 2]                      # (N, 1) f32

        e = f_src + jnp.transpose(f_dst)                             # (N, N) f32
        e = jnp.maximum(e, LEAKY_ALPHA * e)                          # LeakyReLU (alpha<1)
        mask = mask_ref[i]                                           # (N, N) int8
        e = jnp.where(mask != 0, e, NEG_INF)                         # f32 masking

        # masked softmax rows (f32 math); self-loops in the mask guarantee
        # every row has at least one valid entry, so denom >= 1.
        e_max = jnp.max(e, axis=1, keepdims=True)
        p = jnp.exp(e - e_max)                                       # (N, N) f32
        denom = jnp.sum(p, axis=1, keepdims=True)                    # (N, 1) f32

        # deferred normalization: (p @ h) * (1/denom)  (EUP reciprocal, free slot)
        agg = jnp.dot(p.astype(jnp.bfloat16), h_i_bf,
                      preferred_element_type=jnp.float32)            # (N, D) f32
        out_i = agg * pl.reciprocal(denom, approx=True)
        feat_i = jnp.maximum(out_i, 0.0)                             # ReLU
        # dropout: inference-mode identity

        # concat-free final Linear: accumulate this head's fc slice
        logits = logits + jnp.dot(feat_i.astype(jnp.bfloat16),
                                  fcw[(i + 1) * nhid:(i + 2) * nhid, :],
                                  preferred_element_type=jnp.float32)

    logits = logits + fcb_ref[...]                                   # (N, CPAD); padded cols = NEG_INF

    # log_softmax over dim=1 (padded columns contribute exp(~-1e9) == 0)
    m = jnp.max(logits, axis=1, keepdims=True)
    z = logits - m
    lse = jnp.log(jnp.sum(jnp.exp(z), axis=1, keepdims=True))
    out_ref[...] = z - lse


@jax.jit
def dgat_forward(x, W, a_src, a_dst, masks, fc_w, fc_b):
    heads, nfeat, nhid = W.shape
    n = x.shape[0]
    nclass = fc_w.shape[1]

    # ---- host-side (jit-fused) layout prep ---------------------------------
    # fused projection weights: W_all[:, i*nhid:(i+1)*nhid] == W[i]
    w_all = jnp.transpose(W, (1, 0, 2)).reshape(nfeat, heads * nhid).astype(jnp.bfloat16)

    # block-diagonal attention matrix: (heads*nhid, 2*(heads-1))
    a_cat = jnp.zeros((heads * nhid, 2 * (heads - 1)), jnp.float32)
    for i in range(heads - 1):
        a_cat = a_cat.at[i * nhid:(i + 1) * nhid, 2 * i].set(a_src[i])
        a_cat = a_cat.at[i * nhid:(i + 1) * nhid, 2 * i + 1].set(a_dst[i])
    a_cat = a_cat.astype(jnp.bfloat16)

    # int8 masks (4x less DMA / VMEM than f32)
    masks_i8 = (masks != 0).astype(jnp.int8)

    # lane-dense padded fc: zero-padded weights, NEG_INF-padded bias so the
    # padded classes vanish under log-softmax.
    fcw_pad = jnp.zeros((heads * nhid, CPAD), jnp.float32).at[:, :nclass].set(fc_w)
    fcw_pad = fcw_pad.astype(jnp.bfloat16)
    fcb_pad = jnp.full((1, CPAD), NEG_INF, jnp.float32).at[:, :nclass].set(fc_b)

    x_bf = x.astype(jnp.bfloat16)

    vmem = pl.BlockSpec(memory_space=pltpu.MemorySpace.VMEM)
    out_pad = pl.pallas_call(
        functools.partial(_dgat_kernel, heads=heads, nhid=nhid),
        out_shape=jax.ShapeDtypeStruct((n, CPAD), jnp.float32),
        in_specs=[vmem] * 6,
        out_specs=vmem,
        compiler_params=pltpu.CompilerParams(vmem_limit_bytes=32 * 1024 * 1024),
    )(x_bf, w_all, a_cat, masks_i8, fcw_pad, fcb_pad)

    return out_pad[:, :nclass]


def _reference_forward(x, W, a_src, a_dst, masks, fc_w, fc_b):
    """Pure-JAX reference with the same bf16 MXU casts (correctness oracle)."""
    heads, _, nhid = W.shape
    x_bf = x.astype(jnp.bfloat16)
    feats = [jnp.dot(x_bf, W[heads - 1].astype(jnp.bfloat16),
                     preferred_element_type=jnp.float32)]
    for i in range(heads - 1):
        h = jnp.dot(x_bf, W[i].astype(jnp.bfloat16),
                    preferred_element_type=jnp.float32)
        h_bf = h.astype(jnp.bfloat16)
        f_src = jnp.dot(h_bf, a_src[i].astype(jnp.bfloat16)[:, None],
                        preferred_element_type=jnp.float32)
        f_dst = jnp.dot(h_bf, a_dst[i].astype(jnp.bfloat16)[:, None],
                        preferred_element_type=jnp.float32)
        e = f_src + f_dst.T
        e = jnp.maximum(e, LEAKY_ALPHA * e)
        e = jnp.where(masks[i] != 0, e, NEG_INF)
        e = e - jnp.max(e, axis=1, keepdims=True)
        p = jnp.exp(e)
        p = p / jnp.sum(p, axis=1, keepdims=True)
        feats.append(jnp.dot(p.astype(jnp.bfloat16), h_bf,
                             preferred_element_type=jnp.float32))
    feat = jnp.maximum(jnp.concatenate(feats, axis=1), 0.0)
    logits = jnp.dot(feat.astype(jnp.bfloat16), fc_w.astype(jnp.bfloat16),
                     preferred_element_type=jnp.float32) + fc_b
    return jax.nn.log_softmax(logits, axis=1)


def _xavier_uniform(key, shape, fan_in, fan_out, gain=1.414):
    bound = gain * jnp.sqrt(6.0 / (fan_in + fan_out))
    return jax.random.uniform(key, shape, jnp.float32, -bound, bound)


def make_params(key, nfeat, nhid, nclass, heads=4):
    k_w, k_as, k_ad, k_fw, k_fb = jax.random.split(key, 5)
    # W: (heads, nfeat, nhid); torch xavier on 3D -> fan_in = nfeat*nhid, fan_out = heads*nhid
    W = _xavier_uniform(k_w, (heads, nfeat, nhid), nfeat * nhid, heads * nhid)
    a_src = _xavier_uniform(k_as, (heads - 1, nhid), nhid, 1)
    a_dst = _xavier_uniform(k_ad, (heads - 1, nhid), nhid, 1)
    # nn.Linear default init: U(-1/sqrt(in), 1/sqrt(in))
    lim = 1.0 / jnp.sqrt(jnp.float32(nhid * heads))
    fc_w = jax.random.uniform(k_fw, (nhid * heads, nclass), jnp.float32, -lim, lim)
    fc_b = jax.random.uniform(k_fb, (1, nclass), jnp.float32, -lim, lim)
    return W, a_src, a_dst, fc_w, fc_b


def make_khop_masks(adj, k_max=3):
    """k-hop reachability masks (with self loops) for k = 1..k_max, int8."""
    n = adj.shape[0]
    a1 = ((adj + jnp.eye(n, dtype=adj.dtype)) > 0).astype(jnp.float32)
    masks = [a1]
    cur = a1
    for _ in range(k_max - 1):
        cur = (jnp.dot(cur, a1) > 0).astype(jnp.float32)
        masks.append(cur)
    return (jnp.stack(masks, axis=0) != 0).astype(jnp.int8)  # (k_max, N, N)


if __name__ == "__main__":
    key = jax.random.PRNGKey(0)
    N, NFEAT, NHID, NCLASS, HEADS = 16, 32, 16, 8, 4

    k_x, k_adj, k_p = jax.random.split(key, 3)
    x = jax.random.normal(k_x, (N, NFEAT), jnp.float32)

    # Deterministic random symmetric adjacency (no self loops; masks add them).
    r = jax.random.uniform(k_adj, (N, N))
    adj = ((r + r.T) * 0.5 > 0.7).astype(jnp.float32)
    adj = adj * (1.0 - jnp.eye(N, dtype=jnp.float32))

    masks = make_khop_masks(adj, 3)                       # (3, N, N) int8
    W, a_src, a_dst, fc_w, fc_b = make_params(k_p, NFEAT, NHID, NCLASS, HEADS)

    out = dgat_forward(x, W, a_src, a_dst, masks, fc_w, fc_b)
    out = jax.block_until_ready(out)

    assert out.shape == (N, NCLASS)
    assert bool(jnp.all(jnp.isfinite(out)))
    # log-softmax rows should (approximately) exponentiate-sum to 1
    assert bool(jnp.allclose(jnp.sum(jnp.exp(out), axis=1), 1.0, atol=1e-3))
    # correctness vs. pure-JAX reference (same bf16 casts; approx reciprocal tolerance)
    ref = _reference_forward(x, W, a_src, a_dst, masks, fc_w, fc_b)
    assert bool(jnp.allclose(out, ref, atol=5e-2))
    print("KERNEL_OK")
</pallas_src>

<mosaic_0001>
module attributes {stable_mosaic.version = 11 : i64} {
  func.func @_dgat_kernel(%arg0: memref<16x32xbf16, #tpu.memory_space<vmem>>, %arg1: memref<32x64xbf16, #tpu.memory_space<vmem>>, %arg2: memref<64x6xbf16, #tpu.memory_space<vmem>>, %arg3: memref<3x16x16xi8, #tpu.memory_space<vmem>>, %arg4: memref<64x128xbf16, #tpu.memory_space<vmem>>, %arg5: memref<1x128xf32, #tpu.memory_space<vmem>>, %arg6: memref<16x128xf32, #tpu.memory_space<vmem>>) attributes {dimension_semantics = [], scalar_prefetch = 0 : i64, scratch_operands = 0 : i64, tpu.core_type = #tpu.core_type<tc>} {
    %c0 = arith.constant 0 : index
    %c0_0 = arith.constant 0 : index
    %0 = vector.load %arg0[%c0, %c0_0] : memref<16x32xbf16, #tpu.memory_space<vmem>>, vector<16x32xbf16>
    %c0_1 = arith.constant 0 : index
    %c0_2 = arith.constant 0 : index
    %1 = vector.load %arg1[%c0_1, %c0_2] : memref<32x64xbf16, #tpu.memory_space<vmem>>, vector<32x64xbf16>
    %cst = arith.constant dense<0.000000e+00> : vector<16x64xf32>
    %2 = tpu.matmul %0, %1, %cst {dimension_numbers = #tpu.dot_dimension_numbers<[1], [0], [0], [1], [0, 0, 1, 1], [], []>} : vector<16x32xbf16>, vector<32x64xbf16>, vector<16x64xf32> -> vector<16x64xf32>
    %3 = arith.truncf %2 : vector<16x64xf32> to vector<16x64xbf16>
    %c0_3 = arith.constant 0 : index
    %c0_4 = arith.constant 0 : index
    %4 = vector.load %arg2[%c0_3, %c0_4] : memref<64x6xbf16, #tpu.memory_space<vmem>>, vector<64x6xbf16>
    %cst_5 = arith.constant dense<0.000000e+00> : vector<16x6xf32>
    %5 = tpu.matmul %3, %4, %cst_5 {dimension_numbers = #tpu.dot_dimension_numbers<[1], [0], [0], [1], [0, 0, 1, 1], [], []>} : vector<16x64xbf16>, vector<64x6xbf16>, vector<16x6xf32> -> vector<16x6xf32>
    %c0_6 = arith.constant 0 : index
    %c0_7 = arith.constant 0 : index
    %6 = vector.load %arg4[%c0_6, %c0_7] : memref<64x128xbf16, #tpu.memory_space<vmem>>, vector<64x128xbf16>
    %7 = vector.extract_strided_slice %2 {offsets = [0, 48], sizes = [16, 16], strides = [1, 1]} : vector<16x64xf32> to vector<16x16xf32>
    %cst_8 = arith.constant 0.000000e+00 : f32
    %8 = vector.broadcast %cst_8 : f32 to vector<16x16xf32>
    %9 = arith.maximumf %7, %8 : vector<16x16xf32>
    %10 = arith.truncf %9 : vector<16x16xf32> to vector<16x16xbf16>
    %11 = vector.extract_strided_slice %6 {offsets = [0, 0], sizes = [16, 128], strides = [1, 1]} : vector<64x128xbf16> to vector<16x128xbf16>
    %cst_9 = arith.constant dense<0.000000e+00> : vector<16x128xf32>
    %12 = tpu.matmul %10, %11, %cst_9 {dimension_numbers = #tpu.dot_dimension_numbers<[1], [0], [0], [1], [0, 0, 1, 1], [], []>} : vector<16x16xbf16>, vector<16x128xbf16>, vector<16x128xf32> -> vector<16x128xf32>
    %13 = vector.extract_strided_slice %3 {offsets = [0, 0], sizes = [16, 16], strides = [1, 1]} : vector<16x64xbf16> to vector<16x16xbf16>
    %14 = vector.extract_strided_slice %5 {offsets = [0, 0], sizes = [16, 1], strides = [1, 1]} : vector<16x6xf32> to vector<16x1xf32>
    %15 = vector.extract_strided_slice %5 {offsets = [0, 1], sizes = [16, 1], strides = [1, 1]} : vector<16x6xf32> to vector<16x1xf32>
    %16 = tpu.transpose %15, [1, 0] : vector<16x1xf32> -> vector<1x16xf32>
    %17 = vector.broadcast %14 : vector<16x1xf32> to vector<16x16xf32>
    %18 = vector.broadcast %16 : vector<1x16xf32> to vector<16x16xf32>
    %19 = arith.addf %17, %18 : vector<16x16xf32>
    %cst_10 = arith.constant 2.000000e-01 : f32
    %20 = vector.broadcast %cst_10 : f32 to vector<16x16xf32>
    %21 = arith.mulf %20, %19 : vector<16x16xf32>
    %22 = arith.maximumf %19, %21 : vector<16x16xf32>
    %c0_11 = arith.constant 0 : index
    %c0_12 = arith.constant 0 : index
    %c0_13 = arith.constant 0 : index
    %23 = vector.load %arg3[%c0_11, %c0_12, %c0_13] : memref<3x16x16xi8, #tpu.memory_space<vmem>>, vector<1x16x16xi8>
    %24 = vector.shape_cast %23 : vector<1x16x16xi8> to vector<16x16xi8>
    %c0_i8 = arith.constant 0 : i8
    %25 = vector.broadcast %c0_i8 : i8 to vector<16x16xi8>
    %26 = arith.cmpi ne, %24, %25 : vector<16x16xi8>
    %cst_14 = arith.constant -1.000000e+09 : f32
    %27 = vector.broadcast %cst_14 : f32 to vector<16x16xf32>
    %28 = arith.select %26, %22, %27 : vector<16x16xi1>, vector<16x16xf32>
    %cst_15 = arith.constant dense<0xFF800000> : vector<16xf32>
    %29 = vector.multi_reduction <maximumf>, %28, %cst_15 [1] : vector<16x16xf32> to vector<16xf32>
    %30 = vector.shape_cast %29 : vector<16xf32> to vector<16x1xf32>
    %31 = vector.broadcast %30 : vector<16x1xf32> to vector<16x16xf32>
    %32 = arith.subf %28, %31 : vector<16x16xf32>
    %33 = math.exp %32 : vector<16x16xf32>
    %cst_16 = arith.constant dense<0.000000e+00> : vector<16xf32>
    %34 = vector.multi_reduction <add>, %33, %cst_16 [1] : vector<16x16xf32> to vector<16xf32>
    %35 = vector.shape_cast %34 : vector<16xf32> to vector<16x1xf32>
    %36 = arith.truncf %33 : vector<16x16xf32> to vector<16x16xbf16>
    %cst_17 = arith.constant dense<0.000000e+00> : vector<16x16xf32>
    %37 = tpu.matmul %36, %13, %cst_17 {dimension_numbers = #tpu.dot_dimension_numbers<[1], [0], [0], [1], [0, 0, 1, 1], [], []>} : vector<16x16xbf16>, vector<16x16xbf16>, vector<16x16xf32> -> vector<16x16xf32>
    %38 = tpu.reciprocal %35 {approx = true} : vector<16x1xf32> -> vector<16x1xf32>
    %39 = vector.broadcast %38 : vector<16x1xf32> to vector<16x16xf32>
    %40 = arith.mulf %37, %39 : vector<16x16xf32>
    %cst_18 = arith.constant 0.000000e+00 : f32
    %41 = vector.broadcast %cst_18 : f32 to vector<16x16xf32>
    %42 = arith.maximumf %40, %41 : vector<16x16xf32>
    %43 = arith.truncf %42 : vector<16x16xf32> to vector<16x16xbf16>
    %44 = vector.extract_strided_slice %6 {offsets = [16, 0], sizes = [16, 128], strides = [1, 1]} : vector<64x128xbf16> to vector<16x128xbf16>
    %cst_19 = arith.constant dense<0.000000e+00> : vector<16x128xf32>
    %45 = tpu.matmul %43, %44, %cst_19 {dimension_numbers = #tpu.dot_dimension_numbers<[1], [0], [0], [1], [0, 0, 1, 1], [], []>} : vector<16x16xbf16>, vector<16x128xbf16>, vector<16x128xf32> -> vector<16x128xf32>
    %46 = arith.addf %12, %45 : vector<16x128xf32>
    %47 = vector.extract_strided_slice %3 {offsets = [0, 16], sizes = [16, 16], strides = [1, 1]} : vector<16x64xbf16> to vector<16x16xbf16>
    %48 = vector.extract_strided_slice %5 {offsets = [0, 2], sizes = [16, 1], strides = [1, 1]} : vector<16x6xf32> to vector<16x1xf32>
    %49 = vector.extract_strided_slice %5 {offsets = [0, 3], sizes = [16, 1], strides = [1, 1]} : vector<16x6xf32> to vector<16x1xf32>
    %50 = tpu.transpose %49, [1, 0] : vector<16x1xf32> -> vector<1x16xf32>
    %51 = vector.broadcast %48 : vector<16x1xf32> to vector<16x16xf32>
    %52 = vector.broadcast %50 : vector<1x16xf32> to vector<16x16xf32>
    %53 = arith.addf %51, %52 : vector<16x16xf32>
    %cst_20 = arith.constant 2.000000e-01 : f32
    %54 = vector.broadcast %cst_20 : f32 to vector<16x16xf32>
    %55 = arith.mulf %54, %53 : vector<16x16xf32>
    %56 = arith.maximumf %53, %55 : vector<16x16xf32>
    %c1 = arith.constant 1 : index
    %c0_21 = arith.constant 0 : index
    %c0_22 = arith.constant 0 : index
    %57 = vector.load %arg3[%c1, %c0_21, %c0_22] : memref<3x16x16xi8, #tpu.memory_space<vmem>>, vector<1x16x16xi8>
    %58 = vector.shape_cast %57 : vector<1x16x16xi8> to vector<16x16xi8>
    %c0_i8_23 = arith.constant 0 : i8
    %59 = vector.broadcast %c0_i8_23 : i8 to vector<16x16xi8>
    %60 = arith.cmpi ne, %58, %59 : vector<16x16xi8>
    %cst_24 = arith.constant -1.000000e+09 : f32
    %61 = vector.broadcast %cst_24 : f32 to vector<16x16xf32>
    %62 = arith.select %60, %56, %61 : vector<16x16xi1>, vector<16x16xf32>
    %cst_25 = arith.constant dense<0xFF800000> : vector<16xf32>
    %63 = vector.multi_reduction <maximumf>, %62, %cst_25 [1] : vector<16x16xf32> to vector<16xf32>
    %64 = vector.shape_cast %63 : vector<16xf32> to vector<16x1xf32>
    %65 = vector.broadcast %64 : vector<16x1xf32> to vector<16x16xf32>
    %66 = arith.subf %62, %65 : vector<16x16xf32>
    %67 = math.exp %66 : vector<16x16xf32>
    %cst_26 = arith.constant dense<0.000000e+00> : vector<16xf32>
    %68 = vector.multi_reduction <add>, %67, %cst_26 [1] : vector<16x16xf32> to vector<16xf32>
    %69 = vector.shape_cast %68 : vector<16xf32> to vector<16x1xf32>
    %70 = arith.truncf %67 : vector<16x16xf32> to vector<16x16xbf16>
    %cst_27 = arith.constant dense<0.000000e+00> : vector<16x16xf32>
    %71 = tpu.matmul %70, %47, %cst_27 {dimension_numbers = #tpu.dot_dimension_numbers<[1], [0], [0], [1], [0, 0, 1, 1], [], []>} : vector<16x16xbf16>, vector<16x16xbf16>, vector<16x16xf32> -> vector<16x16xf32>
    %72 = tpu.reciprocal %69 {approx = true} : vector<16x1xf32> -> vector<16x1xf32>
    %73 = vector.broadcast %72 : vector<16x1xf32> to vector<16x16xf32>
    %74 = arith.mulf %71, %73 : vector<16x16xf32>
    %cst_28 = arith.constant 0.000000e+00 : f32
    %75 = vector.broadcast %cst_28 : f32 to vector<16x16xf32>
    %76 = arith.maximumf %74, %75 : vector<16x16xf32>
    %77 = arith.truncf %76 : vector<16x16xf32> to vector<16x16xbf16>
    %78 = vector.extract_strided_slice %6 {offsets = [32, 0], sizes = [16, 128], strides = [1, 1]} : vector<64x128xbf16> to vector<16x128xbf16>
    %cst_29 = arith.constant dense<0.000000e+00> : vector<16x128xf32>
    %79 = tpu.matmul %77, %78, %cst_29 {dimension_numbers = #tpu.dot_dimension_numbers<[1], [0], [0], [1], [0, 0, 1, 1], [], []>} : vector<16x16xbf16>, vector<16x128xbf16>, vector<16x128xf32> -> vector<16x128xf32>
    %80 = arith.addf %46, %79 : vector<16x128xf32>
    %81 = vector.extract_strided_slice %3 {offsets = [0, 32], sizes = [16, 16], strides = [1, 1]} : vector<16x64xbf16> to vector<16x16xbf16>
    %82 = vector.extract_strided_slice %5 {offsets = [0, 4], sizes = [16, 1], strides = [1, 1]} : vector<16x6xf32> to vector<16x1xf32>
    %83 = vector.extract_strided_slice %5 {offsets = [0, 5], sizes = [16, 1], strides = [1, 1]} : vector<16x6xf32> to vector<16x1xf32>
    %84 = tpu.transpose %83, [1, 0] : vector<16x1xf32> -> vector<1x16xf32>
    %85 = vector.broadcast %82 : vector<16x1xf32> to vector<16x16xf32>
    %86 = vector.broadcast %84 : vector<1x16xf32> to vector<16x16xf32>
    %87 = arith.addf %85, %86 : vector<16x16xf32>
    %cst_30 = arith.constant 2.000000e-01 : f32
    %88 = vector.broadcast %cst_30 : f32 to vector<16x16xf32>
    %89 = arith.mulf %88, %87 : vector<16x16xf32>
    %90 = arith.maximumf %87, %89 : vector<16x16xf32>
    %c2 = arith.constant 2 : index
    %c0_31 = arith.constant 0 : index
    %c0_32 = arith.constant 0 : index
    %91 = vector.load %arg3[%c2, %c0_31, %c0_32] : memref<3x16x16xi8, #tpu.memory_space<vmem>>, vector<1x16x16xi8>
    %92 = vector.shape_cast %91 : vector<1x16x16xi8> to vector<16x16xi8>
    %c0_i8_33 = arith.constant 0 : i8
    %93 = vector.broadcast %c0_i8_33 : i8 to vector<16x16xi8>
    %94 = arith.cmpi ne, %92, %93 : vector<16x16xi8>
    %cst_34 = arith.constant -1.000000e+09 : f32
    %95 = vector.broadcast %cst_34 : f32 to vector<16x16xf32>
    %96 = arith.select %94, %90, %95 : vector<16x16xi1>, vector<16x16xf32>
    %cst_35 = arith.constant dense<0xFF800000> : vector<16xf32>
    %97 = vector.multi_reduction <maximumf>, %96, %cst_35 [1] : vector<16x16xf32> to vector<16xf32>
    %98 = vector.shape_cast %97 : vector<16xf32> to vector<16x1xf32>
    %99 = vector.broadcast %98 : vector<16x1xf32> to vector<16x16xf32>
    %100 = arith.subf %96, %99 : vector<16x16xf32>
    %101 = math.exp %100 : vector<16x16xf32>
    %cst_36 = arith.constant dense<0.000000e+00> : vector<16xf32>
    %102 = vector.multi_reduction <add>, %101, %cst_36 [1] : vector<16x16xf32> to vector<16xf32>
    %103 = vector.shape_cast %102 : vector<16xf32> to vector<16x1xf32>
    %104 = arith.truncf %101 : vector<16x16xf32> to vector<16x16xbf16>
    %cst_37 = arith.constant dense<0.000000e+00> : vector<16x16xf32>
    %105 = tpu.matmul %104, %81, %cst_37 {dimension_numbers = #tpu.dot_dimension_numbers<[1], [0], [0], [1], [0, 0, 1, 1], [], []>} : vector<16x16xbf16>, vector<16x16xbf16>, vector<16x16xf32> -> vector<16x16xf32>
    %106 = tpu.reciprocal %103 {approx = true} : vector<16x1xf32> -> vector<16x1xf32>
    %107 = vector.broadcast %106 : vector<16x1xf32> to vector<16x16xf32>
    %108 = arith.mulf %105, %107 : vector<16x16xf32>
    %cst_38 = arith.constant 0.000000e+00 : f32
    %109 = vector.broadcast %cst_38 : f32 to vector<16x16xf32>
    %110 = arith.maximumf %108, %109 : vector<16x16xf32>
    %111 = arith.truncf %110 : vector<16x16xf32> to vector<16x16xbf16>
    %112 = vector.extract_strided_slice %6 {offsets = [48, 0], sizes = [16, 128], strides = [1, 1]} : vector<64x128xbf16> to vector<16x128xbf16>
    %cst_39 = arith.constant dense<0.000000e+00> : vector<16x128xf32>
    %113 = tpu.matmul %111, %112, %cst_39 {dimension_numbers = #tpu.dot_dimension_numbers<[1], [0], [0], [1], [0, 0, 1, 1], [], []>} : vector<16x16xbf16>, vector<16x128xbf16>, vector<16x128xf32> -> vector<16x128xf32>
    %114 = arith.addf %80, %113 : vector<16x128xf32>
    %c0_40 = arith.constant 0 : index
    %c0_41 = arith.constant 0 : index
    %115 = vector.load %arg5[%c0_40, %c0_41] : memref<1x128xf32, #tpu.memory_space<vmem>>, vector<1x128xf32>
    %116 = vector.broadcast %115 : vector<1x128xf32> to vector<16x128xf32>
    %117 = arith.addf %114, %116 : vector<16x128xf32>
    %cst_42 = arith.constant dense<0xFF800000> : vector<16xf32>
    %118 = vector.multi_reduction <maximumf>, %117, %cst_42 [1] : vector<16x128xf32> to vector<16xf32>
    %119 = vector.shape_cast %118 : vector<16xf32> to vector<16x1xf32>
    %120 = vector.broadcast %119 : vector<16x1xf32> to vector<16x128xf32>
    %121 = arith.subf %117, %120 : vector<16x128xf32>
    %122 = math.exp %121 : vector<16x128xf32>
    %cst_43 = arith.constant dense<0.000000e+00> : vector<16xf32>
    %123 = vector.multi_reduction <add>, %122, %cst_43 [1] : vector<16x128xf32> to vector<16xf32>
    %124 = vector.shape_cast %123 : vector<16xf32> to vector<16x1xf32>
    %125 = math.log %124 : vector<16x1xf32>
    %126 = vector.broadcast %125 : vector<16x1xf32> to vector<16x128xf32>
    %127 = arith.subf %121, %126 : vector<16x128xf32>
    %c0_44 = arith.constant 0 : index
    %c0_45 = arith.constant 0 : index
    %128 = vector.load %arg6[%c0_44, %c0_45] : memref<16x128xf32, #tpu.memory_space<vmem>>, vector<16x128xf32>
    tpu.vector_store %arg6[%c0_44, %c0_45], %127 {strides = array<i32>} : memref<16x128xf32, #tpu.memory_space<vmem>>, vector<16x128xf32>,
    return
  }
}

</mosaic_0001>

<llo_original>
// kernel: dgat_forward.1
$region0: #{dgat_forward.1}
  #allocation0 [shape = 'u32[]', space=smem, size = 0x4, offset = 0x4, fixed_abs, tag = 'smem constant byte address 0x4 - core index']
  #allocation1 [shape = 'u32[144,128]{1,0:T(1,128)}', space=vmem, size = 0x12000, scoped, tag = 'internal scratch']
  %s0 = inlined_call_operand.vmem [shape: bf16[16,32], index: 0, kind: input, shape index: {}]
  %s1 = inlined_call_operand.vmem [shape: bf16[32,64], index: 1, kind: input, shape index: {}]
  %s2 = inlined_call_operand.vmem [shape: bf16[64,6], index: 2, kind: input, shape index: {}]
  %s3 = inlined_call_operand.vmem [shape: s8[3,16,16], index: 3, kind: input, shape index: {}]
  %s4 = inlined_call_operand.vmem [shape: bf16[64,128], index: 4, kind: input, shape index: {}]
  %s5 = inlined_call_operand.vmem [shape: f32[1,128], index: 5, kind: input, shape index: {}]
  %s6 = inlined_call_operand.vmem [shape: f32[16,128], index: 6, kind: output, shape index: {}]
  %s7 = sld [smem:[#allocation0]]
  $region34: #{dgat_forward.1} parent=0
    _
  %s9 = ssub.s32 1, %s7
  %s10 = scalar_select 0, %s9, %s7
  // Predicated region
  $region2: #{dgat_forward.1} parent=0 // pred_check
    _
  $region3: #{dgat_forward.1} parent=0 // pred_check_branch
    %12 = sbr.rel (0) target = $region5
  $region4: #{dgat_forward.1} parent=0 // pred_region
    _
  $region5: #{dgat_forward.1} parent=0 // pred_fallthru
    _
  // Predicated region
  $region6: #{dgat_forward.1} parent=0 // pred_check
    _
  $region7: #{dgat_forward.1} parent=0 // pred_check_branch
    %14 = sbr.rel (0) target = $region9
  $region8: #{dgat_forward.1} parent=0 // pred_region
    _
  $region9: #{dgat_forward.1} parent=0 // pred_fallthru
    _
  // Predicated region
  $region10: #{dgat_forward.1} parent=0 // pred_check
    _
  $region11: #{dgat_forward.1} parent=0 // pred_check_branch
    %16 = sbr.rel (0) target = $region13
  $region12: #{dgat_forward.1} parent=0 // pred_region
    _
  $region13: #{dgat_forward.1} parent=0 // pred_fallthru
    _
  // Predicated region
  $region14: #{dgat_forward.1} parent=0 // pred_check
    _
  $region15: #{dgat_forward.1} parent=0 // pred_check_branch
    %18 = sbr.rel (0) target = $region17
  $region16: #{dgat_forward.1} parent=0 // pred_region
    _
  $region17: #{dgat_forward.1} parent=0 // pred_fallthru
    _
  // Predicated region
  $region18: #{dgat_forward.1} parent=0 // pred_check
    _
  $region19: #{dgat_forward.1} parent=0 // pred_check_branch
    %20 = sbr.rel (0) target = $region21
  $region20: #{dgat_forward.1} parent=0 // pred_region
    _
  $region21: #{dgat_forward.1} parent=0 // pred_fallthru
    _
  // Predicated region
  $region22: #{dgat_forward.1} parent=0 // pred_check
    _
  $region23: #{dgat_forward.1} parent=0 // pred_check_branch
    %22 = sbr.rel (0) target = $region25
  $region24: #{dgat_forward.1} parent=0 // pred_region
    _
  $region25: #{dgat_forward.1} parent=0 // pred_fallthru
    _
  %v26 = vld [vmem:[%s0] sm:$0xf]
  %v27 = vld [vmem:[%s0 + $0x4] sm:$0xf]
  %v28 = vld [vmem:[%s1] sm:$0xf]
  %v29 = vld [vmem:[%s1 + $0x4] sm:$0xf]
  %v30 = vld [vmem:[%s1 + $0x8] sm:$0xf]
  %v31 = vld [vmem:[%s1 + $0xc] sm:$0xf]
  %v34 = vunpack.c.l.b16 %v26
  %v35 = vunpack.c.l.b16 %v27
  %v36 = vpack.c.b16 %v35, %v34
  %v41 = vunpack.c.l.b16 %v28
  %v42 = vunpack.c.l.b16 %v29
  %v43 = vunpack.c.l.b16 %v30
  %v44 = vunpack.c.l.b16 %v31
  %v45 = vpack.c.b16 %v42, %v41
  %v46 = vpack.c.b16 %v44, %v43
  %vm49 = vcmask 261120
  %v51 = vsel %vm49, %v36, 0
  %53 = vmatprep.subr.bf16.mxu0 0
  %54 = vmatpush1.bf16.msra.mxu0 %v45
  %55 = vmatprep.subr.bf16.mxu0 0
  %56 = vmatpush1.bf16.msra.mxu0 %v46
  %57 = vmatprep.subr.bf16.mxu0 0
  %58 = vmatpush1.bf16.msra.mxu0 0
  %59 = vmatprep.subr.bf16.mxu0 0
  %60 = vmatpush1.bf16.msra.mxu0 0
  %61 = vmatprep.subr.bf16.mxu0 0
  %62 = vmatpush1.bf16.msra.mxu0 0
  %63 = vmatprep.subr.bf16.mxu0 0
  %64 = vmatpush1.bf16.msra.mxu0 0
  %65 = vmatprep.subr.bf16.mxu0 0
  %66 = vmatpush1.bf16.msra.mxu0 0
  %67 = vmatprep.subr.bf16.mxu0 0
  %68 = vmatpush1.bf16.msra.mxu0 0
  %69 = vmatprep.subr.bf16.mxu0 0
  %70 = vmatpush1.bf16.msra.mxu0 0
  %71 = vmatprep.subr.bf16.mxu0 0
  %72 = vmatpush1.bf16.msra.mxu0 0
  %73 = vmatprep.subr.bf16.mxu0 0
  %74 = vmatpush1.bf16.msra.mxu0 0
  %75 = vmatprep.subr.bf16.mxu0 0
  %76 = vmatpush1.bf16.msra.mxu0 0
  %77 = vmatprep.subr.bf16.mxu0 0
  %78 = vmatpush1.bf16.msra.mxu0 0
  %79 = vmatprep.subr.bf16.mxu0 0
  %80 = vmatpush1.bf16.msra.mxu0 0
  %81 = vmatprep.subr.bf16.mxu0 0
  %82 = vmatpush1.bf16.msra.mxu0 0
  %83 = vmatprep.subr.bf16.mxu0 0
  %84 = vmatpush1.bf16.msra.mxu0 0
  %85 = vmatprep.mubr.bf16.mxu0 0
  %86 = vmatmul.mubr.bf16.gmra.mrb[0].mxu0 %v51
  %v87 = vpop.f32.mrb[0].mxu0
  %v88 = vadd.f32 0.0, %v87
  %v89 = vpop.f32.mrb[0].mxu0
  %v90 = vpop.f32.mrb[0].mxu0
  %v91 = vadd.f32 0.0, %v90
  %v92 = vpop.f32.mrb[0].mxu0
  %93 = vdwg.mxu0
  %v94 = vpack.c.bf16 %v91, %v88
  %v95 = vld [vmem:[%s2] sm:$0xf]
  %v96 = vld [vmem:[%s2 + $0x4] sm:$0xf]
  %v97 = vld [vmem:[%s2 + $0x8] sm:$0xf]
  %v98 = vld [vmem:[%s2 + $0xc] sm:$0xf]
  %v99 = vld [vmem:[%s2 + $0x10] sm:$0xf]
  %v100 = vld [vmem:[%s2 + $0x14] sm:$0xf]
  %v101 = vld [vmem:[%s2 + $0x18] sm:$0xf]
  %v102 = vld [vmem:[%s2 + $0x1c] sm:$0xf]
  %v111 = vunpack.c.l.b16 %v95
  %v112 = vunpack.c.l.b16 %v96
  %v113 = vunpack.c.l.b16 %v97
  %v114 = vunpack.c.l.b16 %v98
  %v115 = vunpack.c.l.b16 %v99
  %v116 = vunpack.c.l.b16 %v100
  %v117 = vunpack.c.l.b16 %v101
  %v118 = vunpack.c.l.b16 %v102
  %v119 = vpack.c.b16 %v112, %v111
  %v120 = vpack.c.b16 %v114, %v113
  %v121 = vpack.c.b16 %v116, %v115
  %v122 = vpack.c.b16 %v118, %v117
  %vm127 = vcmask 523264
  %v129 = vsel %vm127, %v94, 0
  %131 = vmatprep.subr.bf16.mxu0 0
  %132 = vmatpush1.bf16.msra.mxu0 %v119
  %133 = vmatprep.subr.bf16.mxu0 0
  %134 = vmatpush1.bf16.msra.mxu0 %v120
  %135 = vmatprep.subr.bf16.mxu0 0
  %136 = vmatpush1.bf16.msra.mxu0 %v121
  %137 = vmatprep.subr.bf16.mxu0 0
  %138 = vmatpush1.bf16.msra.mxu0 %v122
  %139 = vmatprep.subr.bf16.mxu0 0
  %140 = vmatpush1.bf16.msra.mxu0 0
  %141 = vmatprep.subr.bf16.mxu0 0
  %142 = vmatpush1.bf16.msra.mxu0 0
  %143 = vmatprep.subr.bf16.mxu0 0
  %144 = vmatpush1.bf16.msra.mxu0 0
  %145 = vmatprep.subr.bf16.mxu0 0
  %146 = vmatpush1.bf16.msra.mxu0 0
  %147 = vmatprep.subr.bf16.mxu0 0
  %148 = vmatpush1.bf16.msra.mxu0 0
  %149 = vmatprep.subr.bf16.mxu0 0
  %150 = vmatpush1.bf16.msra.mxu0 0
  %151 = vmatprep.subr.bf16.mxu0 0
  %152 = vmatpush1.bf16.msra.mxu0 0
  %153 = vmatprep.subr.bf16.mxu0 0
  %154 = vmatpush1.bf16.msra.mxu0 0
  %155 = vmatprep.subr.bf16.mxu0 0
  %156 = vmatpush1.bf16.msra.mxu0 0
  %157 = vmatprep.subr.bf16.mxu0 0
  %158 = vmatpush1.bf16.msra.mxu0 0
  %159 = vmatprep.subr.bf16.mxu0 0
  %160 = vmatpush1.bf16.msra.mxu0 0
  %161 = vmatprep.subr.bf16.mxu0 0
  %162 = vmatpush1.bf16.msra.mxu0 0
  %163 = vmatprep.mubr.bf16.mxu0 0
  %164 = vmatmul.mubr.bf16.gmra.mrb[0].mxu0 %v129
  %v165 = vpop.f32.mrb[0].mxu0
  %v166 = vadd.f32 0.0, %v165
  %v167 = vpop.f32.mrb[0].mxu0
  %v168 = vpop.f32.mrb[0].mxu0
  %v169 = vadd.f32 0.0, %v168
  %v170 = vpop.f32.mrb[0].mxu0
  %171 = vdwg.mxu0
  %v172 = vld [vmem:[%s4] sm:$0xf]
  %v173 = vld [vmem:[%s4 + $0x4] sm:$0xf]
  %v174 = vld [vmem:[%s4 + $0x8] sm:$0xf]
  %v175 = vld [vmem:[%s4 + $0xc] sm:$0xf]
  %v176 = vld [vmem:[%s4 + $0x10] sm:$0xf]
  %v177 = vld [vmem:[%s4 + $0x14] sm:$0xf]
  %v178 = vld [vmem:[%s4 + $0x18] sm:$0xf]
  %v179 = vld [vmem:[%s4 + $0x1c] sm:$0xf]
  %v180 = vmax.f32 %v88, 0.0
  %v181 = vmax.f32 %v91, 0.0
  %v182 = vpack.c.bf16 %v181, %v180
  %185 = vrot.lane.b32.xlu0 %v166, 127
  %v186 = vpop.permute.xlu0 %185
  %187 = vrot.lane.b32.xlu0 %v169, 127
  %v188 = vpop.permute.xlu0 %187
  %191 = vxpose.xlu0.b32.start [1/16] %v186, 128
  %192 = vxpose.xlu0.b32.cont [2/16] %v188, 128
  %193 = vxpose.xlu0.b32.cont [3/16] 0.0, 128
  %194 = vxpose.xlu0.b32.cont [4/16] 0.0, 128
  %195 = vxpose.xlu0.b32.cont [5/16] 0.0, 128
  %196 = vxpose.xlu0.b32.cont [6/16] 0.0, 128
  %197 = vxpose.xlu0.b32.cont [7/16] 0.0, 128
  %198 = vxpose.xlu0.b32.cont [8/16] 0.0, 128
  %199 = vxpose.xlu0.b32.cont [9/16] 0.0, 128
  %200 = vxpose.xlu0.b32.cont [10/16] 0.0, 128
  %201 = vxpose.xlu0.b32.cont [11/16] 0.0, 128
  %202 = vxpose.xlu0.b32.cont [12/16] 0.0, 128
  %203 = vxpose.xlu0.b32.cont [13/16] 0.0, 128
  %204 = vxpose.xlu0.b32.cont [14/16] 0.0, 128
  %205 = vxpose.xlu0.b32.cont [15/16] 0.0, 128
  %206 = vxpose.xlu0.b32.end [16/16] 0.0, 128
  %v207 = vpop.trf.xlu0
  %v208 = vpop.trf.xlu0
  %v209 = vpop.trf.xlu0
  %v210 = vpop.trf.xlu0
  %v211 = vpop.trf.xlu0
  %v212 = vpop.trf.xlu0
  %v213 = vpop.trf.xlu0
  %v214 = vpop.trf.xlu0
  %v215 = vpop.trf.xlu0
  %v216 = vpop.trf.xlu0
  %v217 = vpop.trf.xlu0
  %v218 = vpop.trf.xlu0
  %v219 = vpop.trf.xlu0
  %v220 = vpop.trf.xlu0
  %v221 = vpop.trf.xlu0
  %v222 = vpop.trf.xlu0
  %223 = vset.pattern.permute.xlu0 0
  %224 = vperm.xlu0 %223, %v166
  %v225 = vpop.permute.xlu0 %224
  %227 = vset.pattern.permute.xlu0 0
  %228 = vperm.xlu0 %227, %v169
  %v229 = vpop.permute.xlu0 %228
  %v231 = vlaneseq
  %v232 = vshrl.u32 %v231, 7
  %v233 = vsub.s32 0, %v232
  %v234 = vrot.slane %v207, %v233
  %v235 = vadd.f32 %v225, %v234
  %v236 = vadd.f32 %v229, %v234
  %v237 = vmul.f32 %v235, 0.2
  %v238 = vmul.f32 %v236, 0.2
  %v239 = vmax.f32 %v235, %v237
  %v240 = vmax.f32 %v236, %v238
  %v241 = vld [vmem:[%s3] sm:$0x3]
  %v242 = vld [vmem:[%s3 + $0x2] sm:$0x3]
  %vm243 = vnez %v241
  %vm244 = vnez %v242
  %v245 = vsel %vm243, 16843009, 0
  %v246 = vsel %vm244, 16843009, 0
  %v247 = vunpack.c.0.s8 %v245
  %v248 = vunpack.c.0.s8 %v246
  %vm249 = vcmp.ne.s32.totalorder %v247, 0
  %vm250 = vcmp.ne.s32.totalorder %v248, 0
  %v251 = vsel %vm249, %v239, -1e+09
  %v252 = vsel %vm250, %v240, -1e+09
  %vm253 = vcmask 130048
  %v254 = vsel %vm253, %v251, -inf
  %255 = vmax.xlane.f32.xlu0 %v254
  %v256 = vpop.xlane.xlu0 %255
  %v257 = vsel %vm253, %v252, -inf
  %258 = vmax.xlane.f32.xlu0 %v257
  %v259 = vpop.xlane.xlu0 %258
  %v260 = vsub.f32 %v251, %v256
  %v261 = vsub.f32 %v252, %v259
  %v262 = vmul.f32 %v260, 1.442695
  %v263 = vpow.pop %v262
  %v264 = vmul.f32 %v261, 1.442695
  %v265 = vpow.pop %v264
  %v266 = vsel %vm253, %v263, 0.0
  %267 = vadd.xlane.f32.xlu0 %v266
  %v268 = vpop.xlane.xlu0 %267
  %v269 = vsel %vm253, %v265, 0.0
  %270 = vadd.xlane.f32.xlu0 %v269
  %v271 = vpop.xlane.xlu0 %270
  %v272 = vpack.c.bf16 %v265, %v263
  %v274 = vsel %vm253, %v272, 0
  %276 = vmatprep.subr.bf16.mxu0 0
  %277 = vmatpush1.bf16.msra.mxu0 %v94
  %278 = vmatprep.subr.bf16.mxu0 0
  %279 = vmatpush1.bf16.msra.mxu0 0
  %280 = vmatprep.subr.bf16.mxu0 0
  %281 = vmatpush1.bf16.msra.mxu0 0
  %282 = vmatprep.subr.bf16.mxu0 0
  %283 = vmatpush1.bf16.msra.mxu0 0
  %284 = vmatprep.subr.bf16.mxu0 0
  %285 = vmatpush1.bf16.msra.mxu0 0
  %286 = vmatprep.subr.bf16.mxu0 0
  %287 = vmatpush1.bf16.msra.mxu0 0
  %288 = vmatprep.subr.bf16.mxu0 0
  %289 = vmatpush1.bf16.msra.mxu0 0
  %290 = vmatprep.subr.bf16.mxu0 0
  %291 = vmatpush1.bf16.msra.mxu0 0
  %292 = vmatprep.subr.bf16.mxu0 0
  %293 = vmatpush1.bf16.msra.mxu0 0
  %294 = vmatprep.subr.bf16.mxu0 0
  %295 = vmatpush1.bf16.msra.mxu0 0
  %296 = vmatprep.subr.bf16.mxu0 0
  %297 = vmatpush1.bf16.msra.mxu0 0
  %298 = vmatprep.subr.bf16.mxu0 0
  %299 = vmatpush1.bf16.msra.mxu0 0
  %300 = vmatprep.subr.bf16.mxu0 0
  %301 = vmatpush1.bf16.msra.mxu0 0
  %302 = vmatprep.subr.bf16.mxu0 0
  %303 = vmatpush1.bf16.msra.mxu0 0
  %304 = vmatprep.subr.bf16.mxu0 0
  %305 = vmatpush1.bf16.msra.mxu0 0
  %306 = vmatprep.subr.bf16.mxu0 0
  %307 = vmatpush1.bf16.msra.mxu0 0
  %308 = vmatprep.mubr.bf16.mxu0 0
  %309 = vmatmul.mubr.bf16.gmra.mrb[0].mxu0 %v274
  %v310 = vpop.f32.mrb[0].mxu0
  %v311 = vadd.f32 0.0, %v310
  %v312 = vpop.f32.mrb[0].mxu0
  %v313 = vpop.f32.mrb[0].mxu0
  %v314 = vadd.f32 0.0, %v313
  %v315 = vpop.f32.mrb[0].mxu0
  %316 = vdwg.mxu0
  %v317 = vrcp.pop %v268
  %v318 = vrcp.pop %v271
  %v319 = vmul.f32 %v311, %v317
  %v320 = vmul.f32 %v314, %v318
  %v321 = vmax.f32 %v319, 0.0
  %v322 = vmax.f32 %v320, 0.0
  %v323 = vpack.c.bf16 %v322, %v321
  %v326 = vunpack.c.l.b16 %v174
  %v327 = vunpack.c.l.b16 %v175
  %v328 = vpack.c.b16 %v327, %v326
  %v331 = vsel %vm253, %v323, 0
  %333 = vmatprep.subr.bf16.mxu0 0
  %334 = vmatpush1.bf16.msra.mxu0 %v328
  %335 = vmatprep.subr.bf16.mxu0 0
  %336 = vmatpush1.bf16.msra.mxu0 0
  %337 = vmatprep.subr.bf16.mxu0 0
  %338 = vmatpush1.bf16.msra.mxu0 0
  %339 = vmatprep.subr.bf16.mxu0 0
  %340 = vmatpush1.bf16.msra.mxu0 0
  %341 = vmatprep.subr.bf16.mxu0 0
  %342 = vmatpush1.bf16.msra.mxu0 0
  %343 = vmatprep.subr.bf16.mxu0 0
  %344 = vmatpush1.bf16.msra.mxu0 0
  %345 = vmatprep.subr.bf16.mxu0 0
  %346 = vmatpush1.bf16.msra.mxu0 0
  %347 = vmatprep.subr.bf16.mxu0 0
  %348 = vmatpush1.bf16.msra.mxu0 0
  %349 = vmatprep.subr.bf16.mxu0 0
  %350 = vmatpush1.bf16.msra.mxu0 0
  %351 = vmatprep.subr.bf16.mxu0 0
  %352 = vmatpush1.bf16.msra.mxu0 0
  %353 = vmatprep.subr.bf16.mxu0 0
  %354 = vmatpush1.bf16.msra.mxu0 0
  %355 = vmatprep.subr.bf16.mxu0 0
  %356 = vmatpush1.bf16.msra.mxu0 0
  %357 = vmatprep.subr.bf16.mxu0 0
  %358 = vmatpush1.bf16.msra.mxu0 0
  %359 = vmatprep.subr.bf16.mxu0 0
  %360 = vmatpush1.bf16.msra.mxu0 0
  %361 = vmatprep.subr.bf16.mxu0 0
  %362 = vmatpush1.bf16.msra.mxu0 0
  %363 = vmatprep.subr.bf16.mxu0 0
  %364 = vmatpush1.bf16.msra.mxu0 0
  %365 = vmatprep.mubr.bf16.mxu0 0
  %366 = vmatmul.mubr.bf16.gmra.mrb[0].mxu0 %v331
  %v367 = vpop.f32.mrb[0].mxu0
  %v368 = vadd.f32 0.0, %v367
  %v369 = vpop.f32.mrb[0].mxu0
  %v370 = vpop.f32.mrb[0].mxu0
  %v371 = vadd.f32 0.0, %v370
  %v372 = vpop.f32.mrb[0].mxu0
  %373 = vdwg.mxu0
  %375 = vrot.lane.b32.xlu0 %v182, 80
  %v376 = vpop.permute.xlu0 %375
  %v379 = vunpack.c.l.b16 %v172
  %v380 = vunpack.c.l.b16 %v173
  %v381 = vpack.c.b16 %v380, %v379
  %v384 = vsel %vm253, %v376, 0
  %386 = vmatprep.subr.bf16.mxu0 0
  %387 = vmatpush1.bf16.msra.mxu0 %v381
  %388 = vmatprep.subr.bf16.mxu0 0
  %389 = vmatpush1.bf16.msra.mxu0 0
  %390 = vmatprep.subr.bf16.mxu0 0
  %391 = vmatpush1.bf16.msra.mxu0 0
  %392 = vmatprep.subr.bf16.mxu0 0
  %393 = vmatpush1.bf16.msra.mxu0 0
  %394 = vmatprep.subr.bf16.mxu0 0
  %395 = vmatpush1.bf16.msra.mxu0 0
  %396 = vmatprep.subr.bf16.mxu0 0
  %397 = vmatpush1.bf16.msra.mxu0 0
  %398 = vmatprep.subr.bf16.mxu0 0
  %399 = vmatpush1.bf16.msra.mxu0 0
  %400 = vmatprep.subr.bf16.mxu0 0
  %401 = vmatpush1.bf16.msra.mxu0 0
  %402 = vmatprep.subr.bf16.mxu0 0
  %403 = vmatpush1.bf16.msra.mxu0 0
  %404 = vmatprep.subr.bf16.mxu0 0
  %405 = vmatpush1.bf16.msra.mxu0 0
  %406 = vmatprep.subr.bf16.mxu0 0
  %407 = vmatpush1.bf16.msra.mxu0 0
  %408 = vmatprep.subr.bf16.mxu0 0
  %409 = vmatpush1.bf16.msra.mxu0 0
  %410 = vmatprep.subr.bf16.mxu0 0
  %411 = vmatpush1.bf16.msra.mxu0 0
  %412 = vmatprep.subr.bf16.mxu0 0
  %413 = vmatpush1.bf16.msra.mxu0 0
  %414 = vmatprep.subr.bf16.mxu0 0
  %415 = vmatpush1.bf16.msra.mxu0 0
  %416 = vmatprep.subr.bf16.mxu0 0
  %417 = vmatpush1.bf16.msra.mxu0 0
  %418 = vmatprep.mubr.bf16.mxu0 0
  %419 = vmatmul.mubr.bf16.gmra.mrb[0].mxu0 %v384
  %v420 = vpop.f32.mrb[0].mxu0
  %v421 = vadd.f32 %v368, %v420
  %v422 = vpop.f32.mrb[0].mxu0
  %v423 = vpop.f32.mrb[0].mxu0
  %v424 = vadd.f32 %v371, %v423
  %v425 = vpop.f32.mrb[0].mxu0
  %426 = vdwg.mxu0
  %427 = vrot.lane.b32.xlu0 %v166, 125
  %v428 = vpop.permute.xlu0 %427
  %429 = vrot.lane.b32.xlu0 %v169, 125
  %v430 = vpop.permute.xlu0 %429
  %433 = vxpose.xlu0.b32.start [1/16] %v428, 128
  %434 = vxpose.xlu0.b32.cont [2/16] %v430, 128
  %435 = vxpose.xlu0.b32.cont [3/16] 0.0, 128
  %436 = vxpose.xlu0.b32.cont [4/16] 0.0, 128
  %437 = vxpose.xlu0.b32.cont [5/16] 0.0, 128
  %438 = vxpose.xlu0.b32.cont [6/16] 0.0, 128
  %439 = vxpose.xlu0.b32.cont [7/16] 0.0, 128
  %440 = vxpose.xlu0.b32.cont [8/16] 0.0, 128
  %441 = vxpose.xlu0.b32.cont [9/16] 0.0, 128
  %442 = vxpose.xlu0.b32.cont [10/16] 0.0, 128
  %443 = vxpose.xlu0.b32.cont [11/16] 0.0, 128
  %444 = vxpose.xlu0.b32.cont [12/16] 0.0, 128
  %445 = vxpose.xlu0.b32.cont [13/16] 0.0, 128
  %446 = vxpose.xlu0.b32.cont [14/16] 0.0, 128
  %447 = vxpose.xlu0.b32.cont [15/16] 0.0, 128
  %448 = vxpose.xlu0.b32.end [16/16] 0.0, 128
  %v449 = vpop.trf.xlu0
  %v450 = vpop.trf.xlu0
  %v451 = vpop.trf.xlu0
  %v452 = vpop.trf.xlu0
  %v453 = vpop.trf.xlu0
  %v454 = vpop.trf.xlu0
  %v455 = vpop.trf.xlu0
  %v456 = vpop.trf.xlu0
  %v457 = vpop.trf.xlu0
  %v458 = vpop.trf.xlu0
  %v459 = vpop.trf.xlu0
  %v460 = vpop.trf.xlu0
  %v461 = vpop.trf.xlu0
  %v462 = vpop.trf.xlu0
  %v463 = vpop.trf.xlu0
  %v464 = vpop.trf.xlu0
  %465 = vset.pattern.permute.xlu0 2
  %466 = vperm.xlu0 %465, %v166
  %v467 = vpop.permute.xlu0 %466
  %469 = vset.pattern.permute.xlu0 2
  %470 = vperm.xlu0 %469, %v169
  %v471 = vpop.permute.xlu0 %470
  %v473 = vlaneseq
  %v474 = vshrl.u32 %v473, 7
  %v475 = vsub.s32 0, %v474
  %v476 = vrot.slane %v449, %v475
  %v477 = vadd.f32 %v467, %v476
  %v478 = vadd.f32 %v471, %v476
  %v479 = vmul.f32 %v477, 0.2
  %v480 = vmul.f32 %v478, 0.2
  %v481 = vmax.f32 %v477, %v479
  %v482 = vmax.f32 %v478, %v480
  %s483 = scalar_lea.vmem %s3, 4
  %v484 = vld [vmem:[%s483] sm:$0x3]
  %v485 = vld [vmem:[%s483 + $0x2] sm:$0x3]
  %vm486 = vnez %v484
  %vm487 = vnez %v485
  %v488 = vsel %vm486, 16843009, 0
  %v489 = vsel %vm487, 16843009, 0
  %v490 = vunpack.c.0.s8 %v488
  %v491 = vunpack.c.0.s8 %v489
  %vm492 = vcmp.ne.s32.totalorder %v490, 0
  %vm493 = vcmp.ne.s32.totalorder %v491, 0
  %v494 = vsel %vm492, %v481, -1e+09
  %v495 = vsel %vm493, %v482, -1e+09
  %v496 = vsel %vm253, %v494, -inf
  %497 = vmax.xlane.f32.xlu0 %v496
  %v498 = vpop.xlane.xlu0 %497
  %v499 = vsel %vm253, %v495, -inf
  %500 = vmax.xlane.f32.xlu0 %v499
  %v501 = vpop.xlane.xlu0 %500
  %v502 = vsub.f32 %v494, %v498
  %v503 = vsub.f32 %v495, %v501
  %v504 = vmul.f32 %v502, 1.442695
  %v505 = vpow.pop %v504
  %v506 = vmul.f32 %v503, 1.442695
  %v507 = vpow.pop %v506
  %v508 = vsel %vm253, %v505, 0.0
  %509 = vadd.xlane.f32.xlu0 %v508
  %v510 = vpop.xlane.xlu0 %509
  %v511 = vsel %vm253, %v507, 0.0
  %512 = vadd.xlane.f32.xlu0 %v511
  %v513 = vpop.xlane.xlu0 %512
  %v514 = vpack.c.bf16 %v507, %v505
  %516 = vrot.lane.b32.xlu0 %v94, 112
  %v517 = vpop.permute.xlu0 %516
  %v520 = vsel %vm253, %v514, 0
  %522 = vmatprep.subr.bf16.mxu0 0
  %523 = vmatpush1.bf16.msra.mxu0 %v517
  %524 = vmatprep.subr.bf16.mxu0 0
  %525 = vmatpush1.bf16.msra.mxu0 0
  %526 = vmatprep.subr.bf16.mxu0 0
  %527 = vmatpush1.bf16.msra.mxu0 0
  %528 = vmatprep.subr.bf16.mxu0 0
  %529 = vmatpush1.bf16.msra.mxu0 0
  %530 = vmatprep.subr.bf16.mxu0 0
  %531 = vmatpush1.bf16.msra.mxu0 0
  %532 = vmatprep.subr.bf16.mxu0 0
  %533 = vmatpush1.bf16.msra.mxu0 0
  %534 = vmatprep.subr.bf16.mxu0 0
  %535 = vmatpush1.bf16.msra.mxu0 0
  %536 = vmatprep.subr.bf16.mxu0 0
  %537 = vmatpush1.bf16.msra.mxu0 0
  %538 = vmatprep.subr.bf16.mxu0 0
  %539 = vmatpush1.bf16.msra.mxu0 0
  %540 = vmatprep.subr.bf16.mxu0 0
  %541 = vmatpush1.bf16.msra.mxu0 0
  %542 = vmatprep.subr.bf16.mxu0 0
  %543 = vmatpush1.bf16.msra.mxu0 0
  %544 = vmatprep.subr.bf16.mxu0 0
  %545 = vmatpush1.bf16.msra.mxu0 0
  %546 = vmatprep.subr.bf16.mxu0 0
  %547 = vmatpush1.bf16.msra.mxu0 0
  %548 = vmatprep.subr.bf16.mxu0 0
  %549 = vmatpush1.bf16.msra.mxu0 0
  %550 = vmatprep.subr.bf16.mxu0 0
  %551 = vmatpush1.bf16.msra.mxu0 0
  %552 = vmatprep.subr.bf16.mxu0 0
  %553 = vmatpush1.bf16.msra.mxu0 0
  %554 = vmatprep.mubr.bf16.mxu0 0
  %555 = vmatmul.mubr.bf16.gmra.mrb[0].mxu0 %v520
  %v556 = vpop.f32.mrb[0].mxu0
  %v557 = vadd.f32 0.0, %v556
  %v558 = vpop.f32.mrb[0].mxu0
  %v559 = vpop.f32.mrb[0].mxu0
  %v560 = vadd.f32 0.0, %v559
  %v561 = vpop.f32.mrb[0].mxu0
  %562 = vdwg.mxu0
  %v563 = vrcp.pop %v510
  %v564 = vrcp.pop %v513
  %v565 = vmul.f32 %v557, %v563
  %v566 = vmul.f32 %v560, %v564
  %v567 = vmax.f32 %v565, 0.0
  %v568 = vmax.f32 %v566, 0.0
  %v569 = vpack.c.bf16 %v568, %v567
  %v572 = vunpack.c.l.b16 %v176
  %v573 = vunpack.c.l.b16 %v177
  %v574 = vpack.c.b16 %v573, %v572
  %v577 = vsel %vm253, %v569, 0
  %579 = vmatprep.subr.bf16.mxu0 0
  %580 = vmatpush1.bf16.msra.mxu0 %v574
  %581 = vmatprep.subr.bf16.mxu0 0
  %582 = vmatpush1.bf16.msra.mxu0 0
  %583 = vmatprep.subr.bf16.mxu0 0
  %584 = vmatpush1.bf16.msra.mxu0 0
  %585 = vmatprep.subr.bf16.mxu0 0
  %586 = vmatpush1.bf16.msra.mxu0 0
  %587 = vmatprep.subr.bf16.mxu0 0
  %588 = vmatpush1.bf16.msra.mxu0 0
  %589 = vmatprep.subr.bf16.mxu0 0
  %590 = vmatpush1.bf16.msra.mxu0 0
  %591 = vmatprep.subr.bf16.mxu0 0
  %592 = vmatpush1.bf16.msra.mxu0 0
  %593 = vmatprep.subr.bf16.mxu0 0
  %594 = vmatpush1.bf16.msra.mxu0 0
  %595 = vmatprep.subr.bf16.mxu0 0
  %596 = vmatpush1.bf16.msra.mxu0 0
  %597 = vmatprep.subr.bf16.mxu0 0
  %598 = vmatpush1.bf16.msra.mxu0 0
  %599 = vmatprep.subr.bf16.mxu0 0
  %600 = vmatpush1.bf16.msra.mxu0 0
  %601 = vmatprep.subr.bf16.mxu0 0
  %602 = vmatpush1.bf16.msra.mxu0 0
  %603 = vmatprep.subr.bf16.mxu0 0
  %604 = vmatpush1.bf16.msra.mxu0 0
  %605 = vmatprep.subr.bf16.mxu0 0
  %606 = vmatpush1.bf16.msra.mxu0 0
  %607 = vmatprep.subr.bf16.mxu0 0
  %608 = vmatpush1.bf16.msra.mxu0 0
  %609 = vmatprep.subr.bf16.mxu0 0
  %610 = vmatpush1.bf16.msra.mxu0 0
  %611 = vmatprep.mubr.bf16.mxu0 0
  %612 = vmatmul.mubr.bf16.gmra.mrb[0].mxu0 %v577
  %v613 = vpop.f32.mrb[0].mxu0
  %v614 = vadd.f32 0.0, %v613
  %v615 = vpop.f32.mrb[0].mxu0
  %v616 = vpop.f32.mrb[0].mxu0
  %v617 = vadd.f32 0.0, %v616
  %v618 = vpop.f32.mrb[0].mxu0
  %619 = vdwg.mxu0
  %v620 = vadd.f32 %v421, %v614
  %v621 = vadd.f32 %v424, %v617
  %622 = vrot.lane.b32.xlu0 %v166, 123
  %v623 = vpop.permute.xlu0 %622
  %624 = vrot.lane.b32.xlu0 %v169, 123
  %v625 = vpop.permute.xlu0 %624
  %628 = vxpose.xlu0.b32.start [1/16] %v623, 128
  %629 = vxpose.xlu0.b32.cont [2/16] %v625, 128
  %630 = vxpose.xlu0.b32.cont [3/16] 0.0, 128
  %631 = vxpose.xlu0.b32.cont [4/16] 0.0, 128
  %632 = vxpose.xlu0.b32.cont [5/16] 0.0, 128
  %633 = vxpose.xlu0.b32.cont [6/16] 0.0, 128
  %634 = vxpose.xlu0.b32.cont [7/16] 0.0, 128
  %635 = vxpose.xlu0.b32.cont [8/16] 0.0, 128
  %636 = vxpose.xlu0.b32.cont [9/16] 0.0, 128
  %637 = vxpose.xlu0.b32.cont [10/16] 0.0, 128
  %638 = vxpose.xlu0.b32.cont [11/16] 0.0, 128
  %639 = vxpose.xlu0.b32.cont [12/16] 0.0, 128
  %640 = vxpose.xlu0.b32.cont [13/16] 0.0, 128
  %641 = vxpose.xlu0.b32.cont [14/16] 0.0, 128
  %642 = vxpose.xlu0.b32.cont [15/16] 0.0, 128
  %643 = vxpose.xlu0.b32.end [16/16] 0.0, 128
  %v644 = vpop.trf.xlu0
  %v645 = vpop.trf.xlu0
  %v646 = vpop.trf.xlu0
  %v647 = vpop.trf.xlu0
  %v648 = vpop.trf.xlu0
  %v649 = vpop.trf.xlu0
  %v650 = vpop.trf.xlu0
  %v651 = vpop.trf.xlu0
  %v652 = vpop.trf.xlu0
  %v653 = vpop.trf.xlu0
  %v654 = vpop.trf.xlu0
  %v655 = vpop.trf.xlu0
  %v656 = vpop.trf.xlu0
  %v657 = vpop.trf.xlu0
  %v658 = vpop.trf.xlu0
  %v659 = vpop.trf.xlu0
  %660 = vset.pattern.permute.xlu0 4
  %661 = vperm.xlu0 %660, %v166
  %v662 = vpop.permute.xlu0 %661
  %664 = vset.pattern.permute.xlu0 4
  %665 = vperm.xlu0 %664, %v169
  %v666 = vpop.permute.xlu0 %665
  %v668 = vlaneseq
  %v669 = vshrl.u32 %v668, 7
  %v670 = vsub.s32 0, %v669
  %v671 = vrot.slane %v644, %v670
  %v672 = vadd.f32 %v662, %v671
  %v673 = vadd.f32 %v666, %v671
  %v674 = vmul.f32 %v672, 0.2
  %v675 = vmul.f32 %v673, 0.2
  %v676 = vmax.f32 %v672, %v674
  %v677 = vmax.f32 %v673, %v675
  %s678 = scalar_lea.vmem %s3, 8
  %v679 = vld [vmem:[%s678] sm:$0x3]
  %v680 = vld [vmem:[%s678 + $0x2] sm:$0x3]
  %vm681 = vnez %v679
  %vm682 = vnez %v680
  %v683 = vsel %vm681, 16843009, 0
  %v684 = vsel %vm682, 16843009, 0
  %v685 = vunpack.c.0.s8 %v683
  %v686 = vunpack.c.0.s8 %v684
  %vm687 = vcmp.ne.s32.totalorder %v685, 0
  %vm688 = vcmp.ne.s32.totalorder %v686, 0
  %v689 = vsel %vm687, %v676, -1e+09
  %v690 = vsel %vm688, %v677, -1e+09
  %v691 = vsel %vm253, %v689, -inf
  %692 = vmax.xlane.f32.xlu0 %v691
  %v693 = vpop.xlane.xlu0 %692
  %v694 = vsel %vm253, %v690, -inf
  %695 = vmax.xlane.f32.xlu0 %v694
  %v696 = vpop.xlane.xlu0 %695
  %v697 = vsub.f32 %v689, %v693
  %v698 = vsub.f32 %v690, %v696
  %v699 = vmul.f32 %v697, 1.442695
  %v700 = vpow.pop %v699
  %v701 = vmul.f32 %v698, 1.442695
  %v702 = vpow.pop %v701
  %v703 = vsel %vm253, %v700, 0.0
  %704 = vadd.xlane.f32.xlu0 %v703
  %v705 = vpop.xlane.xlu0 %704
  %v706 = vsel %vm253, %v702, 0.0
  %707 = vadd.xlane.f32.xlu0 %v706
  %v708 = vpop.xlane.xlu0 %707
  %v709 = vpack.c.bf16 %v702, %v700
  %710 = vrot.lane.b32.xlu0 %v94, 96
  %v711 = vpop.permute.xlu0 %710
  %v714 = vsel %vm253, %v709, 0
  %716 = vmatprep.subr.bf16.mxu0 0
  %717 = vmatpush1.bf16.msra.mxu0 %v711
  %718 = vmatprep.subr.bf16.mxu0 0
  %719 = vmatpush1.bf16.msra.mxu0 0
  %720 = vmatprep.subr.bf16.mxu0 0
  %721 = vmatpush1.bf16.msra.mxu0 0
  %722 = vmatprep.subr.bf16.mxu0 0
  %723 = vmatpush1.bf16.msra.mxu0 0
  %724 = vmatprep.subr.bf16.mxu0 0
  %725 = vmatpush1.bf16.msra.mxu0 0
  %726 = vmatprep.subr.bf16.mxu0 0
  %727 = vmatpush1.bf16.msra.mxu0 0
  %728 = vmatprep.subr.bf16.mxu0 0
  %729 = vmatpush1.bf16.msra.mxu0 0
  %730 = vmatprep.subr.bf16.mxu0 0
  %731 = vmatpush1.bf16.msra.mxu0 0
  %732 = vmatprep.subr.bf16.mxu0 0
  %733 = vmatpush1.bf16.msra.mxu0 0
  %734 = vmatprep.subr.bf16.mxu0 0
  %735 = vmatpush1.bf16.msra.mxu0 0
  %736 = vmatprep.subr.bf16.mxu0 0
  %737 = vmatpush1.bf16.msra.mxu0 0
  %738 = vmatprep.subr.bf16.mxu0 0
  %739 = vmatpush1.bf16.msra.mxu0 0
  %740 = vmatprep.subr.bf16.mxu0 0
  %741 = vmatpush1.bf16.msra.mxu0 0
  %742 = vmatprep.subr.bf16.mxu0 0
  %743 = vmatpush1.bf16.msra.mxu0 0
  %744 = vmatprep.subr.bf16.mxu0 0
  %745 = vmatpush1.bf16.msra.mxu0 0
  %746 = vmatprep.subr.bf16.mxu0 0
  %747 = vmatpush1.bf16.msra.mxu0 0
  %748 = vmatprep.mubr.bf16.mxu0 0
  %749 = vmatmul.mubr.bf16.gmra.mrb[0].mxu0 %v714
  %v750 = vpop.f32.mrb[0].mxu0
  %v751 = vadd.f32 0.0, %v750
  %v752 = vpop.f32.mrb[0].mxu0
  %v753 = vpop.f32.mrb[0].mxu0
  %v754 = vadd.f32 0.0, %v753
  %v755 = vpop.f32.mrb[0].mxu0
  %756 = vdwg.mxu0
  %v757 = vrcp.pop %v705
  %v758 = vrcp.pop %v708
  %v759 = vmul.f32 %v751, %v757
  %v760 = vmul.f32 %v754, %v758
  %v761 = vmax.f32 %v759, 0.0
  %v762 = vmax.f32 %v760, 0.0
  %v763 = vpack.c.bf16 %v762, %v761
  %v766 = vunpack.c.l.b16 %v178
  %v767 = vunpack.c.l.b16 %v179
  %v768 = vpack.c.b16 %v767, %v766
  %v771 = vsel %vm253, %v763, 0
  %773 = vmatprep.subr.bf16.mxu0 0
  %774 = vmatpush1.bf16.msra.mxu0 %v768
  %775 = vmatprep.subr.bf16.mxu0 0
  %776 = vmatpush1.bf16.msra.mxu0 0
  %777 = vmatprep.subr.bf16.mxu0 0
  %778 = vmatpush1.bf16.msra.mxu0 0
  %779 = vmatprep.subr.bf16.mxu0 0
  %780 = vmatpush1.bf16.msra.mxu0 0
  %781 = vmatprep.subr.bf16.mxu0 0
  %782 = vmatpush1.bf16.msra.mxu0 0
  %783 = vmatprep.subr.bf16.mxu0 0
  %784 = vmatpush1.bf16.msra.mxu0 0
  %785 = vmatprep.subr.bf16.mxu0 0
  %786 = vmatpush1.bf16.msra.mxu0 0
  %787 = vmatprep.subr.bf16.mxu0 0
  %788 = vmatpush1.bf16.msra.mxu0 0
  %789 = vmatprep.subr.bf16.mxu0 0
  %790 = vmatpush1.bf16.msra.mxu0 0
  %791 = vmatprep.subr.bf16.mxu0 0
  %792 = vmatpush1.bf16.msra.mxu0 0
  %793 = vmatprep.subr.bf16.mxu0 0
  %794 = vmatpush1.bf16.msra.mxu0 0
  %795 = vmatprep.subr.bf16.mxu0 0
  %796 = vmatpush1.bf16.msra.mxu0 0
  %797 = vmatprep.subr.bf16.mxu0 0
  %798 = vmatpush1.bf16.msra.mxu0 0
  %799 = vmatprep.subr.bf16.mxu0 0
  %800 = vmatpush1.bf16.msra.mxu0 0
  %801 = vmatprep.subr.bf16.mxu0 0
  %802 = vmatpush1.bf16.msra.mxu0 0
  %803 = vmatprep.subr.bf16.mxu0 0
  %804 = vmatpush1.bf16.msra.mxu0 0
  %805 = vmatprep.mubr.bf16.mxu0 0
  %806 = vmatmul.mubr.bf16.gmra.mrb[0].mxu0 %v771
  %v807 = vpop.f32.mrb[0].mxu0
  %v808 = vadd.f32 0.0, %v807
  %v809 = vpop.f32.mrb[0].mxu0
  %v810 = vpop.f32.mrb[0].mxu0
  %v811 = vadd.f32 0.0, %v810
  %v812 = vpop.f32.mrb[0].mxu0
  %813 = vdwg.mxu0
  %v814 = vadd.f32 %v620, %v808
  %v815 = vadd.f32 %v621, %v811
  %v816 = vld [vmem:[%s5] sm:$0x1]
  %v818 = vlaneseq
  %v819 = vshrl.u32 %v818, 7
  %v820 = vsub.s32 0, %v819
  %v821 = vrot.slane %v816, %v820
  %v823 = vadd.f32 %v814, %v821
  %v824 = vadd.f32 %v815, %v821
  %825 = vmax.xlane.f32.xlu0 %v823
  %v826 = vpop.xlane.xlu0 %825
  %827 = vmax.xlane.f32.xlu0 %v824
  %v828 = vpop.xlane.xlu0 %827
  %v829 = vsub.f32 %v823, %v826
  %v830 = vsub.f32 %v824, %v828
  %v831 = vmul.f32 %v829, 1.442695
  %v832 = vpow.pop %v831
  %v833 = vmul.f32 %v830, 1.442695
  %v834 = vpow.pop %v833
  %835 = vadd.xlane.f32.xlu0 %v832
  %v836 = vpop.xlane.xlu0 %835
  %837 = vadd.xlane.f32.xlu0 %v834
  %v838 = vpop.xlane.xlu0 %837
  %v839 = vlog2.pop %v836
  %v840 = vmul.f32 %v839, 0.6931472
  %v841 = vlog2.pop %v838
  %v842 = vmul.f32 %v841, 0.6931472
  %v843 = vsub.f32 %v829, %v840
  %v844 = vsub.f32 %v830, %v842
  %845 = vst [vmem:[%s6] sm:$0xff] %v843
  %846 = vst [vmem:[%s6 + $0x8] sm:$0xff] %v844
  // Predicated region
  $region26: #{dgat_forward.1} parent=0 // pred_check
    _
  $region27: #{dgat_forward.1} parent=0 // pred_check_branch
    %848 = sbr.rel (0) target = $region29
  $region28: #{dgat_forward.1} parent=0 // pred_region
    _
  $region29: #{dgat_forward.1} parent=0 // pred_fallthru
    _
  // Predicated region
  $region30: #{dgat_forward.1} parent=0 // pred_check
    _
  $region31: #{dgat_forward.1} parent=0 // pred_check_branch
    %850 = sbr.rel (0) target = $region33
  $region32: #{dgat_forward.1} parent=0 // pred_region
    _
  $region33: #{dgat_forward.1} parent=0 // pred_fallthru
    _

</llo_original>
